<compile_context>
chip_gen: v7x
topology: tpu7x:2x2x1
jax: 0.10.0
libtpu: 0.0.40
codegen_flags: <defaults>
</compile_context>

<pallas_src>
import jax
import jax.numpy as jnp
from jax import lax
from jax.experimental import pallas as pl
from jax.experimental.pallas import tpu as pltpu

_MIB = 1024 * 1024


def _l2_normalize_kernel(x_ref, o_ref):
    # Block: (B, C, TILE_N).  C sits on sublanes, N on lanes, so the per-point
    # channel reduction is a sublane reduction followed by a broadcast mul.
    # Reduction runs in f32 (numerically safe, works on v5e which has no bf16
    # VPU/EUP); the final scale is done in the native dtype so bf16 tiles do
    # not materialize a second full f32 copy on the store path.
    x = x_ref[...]                                      # (B, C, TILE_N), native dtype
    xf = x.astype(jnp.float32)
    sq_sum = jnp.sum(xf * xf, axis=1, keepdims=True)    # (B, 1, TILE_N), f32
    # NOTE: no epsilon — faithful to torch.norm / div (all-zero columns -> inf/nan).
    inv_norm = lax.rsqrt(sq_sum)                        # one EUP op (vs sqrt + div)
    o_ref[...] = x * inv_norm.astype(x.dtype)


def _round_down_128(x):
    return (x // 128) * 128


def _vmem_capacity_bytes():
    """Physical VMEM per core; conservative (v7x-sized) default if unknown."""
    try:
        info = pltpu.get_tpu_info()
        cap = getattr(info, "vmem_capacity_bytes", None)
        if cap:
            return int(cap)
    except Exception:
        pass
    return 64 * _MIB


def _l2_normalize_xla(x):
    """Pure-XLA fallback (tiny C / tiny N / oversized minimal block)."""
    xf = x.astype(jnp.float32)
    norm = jnp.sqrt(jnp.sum(xf * xf, axis=1, keepdims=True))
    return (xf / norm).astype(x.dtype)


def jointnet_normalize_features(features):
    """Pallas implementation of the channel-wise L2 feature normalization in
    JointNet.forward.

    Args:
      features: (B, C, N) array (PyTorch NCW layout).
    Returns:
      (B, C, N) array with each (C,) column normalized to unit L2 norm.
    """
    B, C, N = features.shape
    itemsize = jnp.dtype(features.dtype).itemsize
    vmem_cap = _vmem_capacity_bytes()

    # Generation-aware block target.  Big-VMEM chips (v5e/v6e: 128 MiB) take
    # ~8 MiB blocks (~32-48 MiB double-buffered in+out); small-VMEM chips
    # (v7x: 64 MiB) take ~4 MiB blocks and we keep >= 4 grid steps so each of
    # the two TensorCores has >= 2 steps to pipeline against.
    if vmem_cap >= 100 * _MIB:
        target_block_bytes = 8 * _MIB
        min_grid_steps = 1
    else:
        target_block_bytes = 4 * _MIB
        min_grid_steps = 4

    # Tiny-C wastes most of each vreg (C is the sublane axis), tiny-N cannot
    # fill a lane tile, and a minimal 128-lane block that cannot be
    # double-buffered makes the standalone kernel pointless: let XLA fuse it.
    min_sublanes = max(8, 32 // itemsize)            # 8 f32 / 16 bf16 / 32 int8
    minimal_block_bytes = B * C * 128 * itemsize
    if C < min_sublanes or N < 128 or minimal_block_bytes > vmem_cap // 8:
        return _l2_normalize_xla(features)

    # Lane-dense tile: biggest multiple of 128 that fits the block budget and
    # never exceeds N (partial last block handled by cdiv grid + masking).
    per_lane_bytes = B * C * itemsize
    max_tile = max(128, _round_down_128(target_block_bytes // per_lane_bytes))
    tile_n = min(max_tile, _round_down_128(N))
    if min_grid_steps > 1:
        split_tile = _round_down_128(N // min_grid_steps)
        if split_tile >= 128:
            tile_n = min(tile_n, split_tile)
    tile_n = max(tile_n, 128)
    grid_n = pl.cdiv(N, tile_n)                      # last block masked if needed

    # Scoped-VMEM budget from the real footprint: double-buffered in + out
    # blocks plus f32 intermediate headroom, clamped to 3/4 of physical VMEM.
    block_bytes = B * C * tile_n * itemsize
    f32_block_bytes = B * C * tile_n * 4
    vmem_limit = 2 * 2 * block_bytes + 4 * f32_block_bytes
    vmem_limit = max(vmem_limit, 32 * _MIB)
    vmem_limit = int(min(vmem_limit, (vmem_cap * 3) // 4))

    return pl.pallas_call(
        _l2_normalize_kernel,
        out_shape=jax.ShapeDtypeStruct((B, C, N), features.dtype),
        grid_spec=pltpu.PrefetchScalarGridSpec(
            num_scalar_prefetch=0,
            grid=(grid_n,),
            in_specs=[pl.BlockSpec((B, C, tile_n), lambda n: (0, 0, n))],
            out_specs=pl.BlockSpec((B, C, tile_n), lambda n: (0, 0, n)),
        ),
        compiler_params=pltpu.CompilerParams(
            dimension_semantics=("parallel",),
            vmem_limit_bytes=vmem_limit,
        ),
    )(features)


def jointnet_forward(data_dict):
    """Minimal JointNet.forward analogue: normalizes the vote features.

    Only the tensor math that lives directly inside JointNet.forward is
    executed (see TODO at the top of the file for the sub-modules).  In a full
    model, prefer fusing this normalization into the adjacent producer /
    consumer kernel instead of a standalone launch.
    """
    features = data_dict["vote_features"]          # (B, C, N)
    features = jointnet_normalize_features(features)
    out = dict(data_dict)
    out["vote_features"] = features
    return out


if __name__ == "__main__":
    key = jax.random.PRNGKey(0)
    k_feat, k_xyz, k_feat2, k_feat3 = jax.random.split(key, 4)

    # 1) Main path: lane-aligned N (multiple of 128).
    B, C, N = 2, 32, 384
    features = jax.random.normal(k_feat, (B, C, N), dtype=jnp.float32)
    vote_xyz = jax.random.normal(k_xyz, (B, N, 3), dtype=jnp.float32)
    out = jointnet_forward({"vote_features": features, "vote_xyz": vote_xyz})
    result = jax.block_until_ready(out["vote_features"])
    ref = features / jnp.linalg.norm(features, axis=1, keepdims=True)
    assert result.shape == (B, C, N)
    assert jnp.allclose(result, ref, atol=1e-5, rtol=1e-5)

    # 2) N not a multiple of 128 -> exercises the cdiv + masked-last-block path.
    features2 = jax.random.normal(k_feat2, (B, C, 200), dtype=jnp.float32)
    result2 = jax.block_until_ready(jointnet_normalize_features(features2))
    ref2 = features2 / jnp.linalg.norm(features2, axis=1, keepdims=True)
    assert jnp.allclose(result2, ref2, atol=1e-5, rtol=1e-5)

    # 3) Tiny channel axis -> XLA fallback path.
    features3 = jax.random.normal(k_feat3, (B, 4, 256), dtype=jnp.float32)
    result3 = jax.block_until_ready(jointnet_normalize_features(features3))
    ref3 = features3 / jnp.linalg.norm(features3, axis=1, keepdims=True)
    assert jnp.allclose(result3, ref3, atol=1e-5, rtol=1e-5)

    print("KERNEL_OK")
</pallas_src>

<mosaic_0001>
module attributes {stable_mosaic.version = 11 : i64} {
  func.func @_l2_normalize_kernel(%arg0: i32, %arg1: memref<2x32x384xf32, #tpu.memory_space<vmem>>, %arg2: memref<2x32x384xf32, #tpu.memory_space<vmem>>) attributes {dimension_semantics = [#tpu.dimension_semantics<parallel>], iteration_bounds = array<i64: 1>, scalar_prefetch = 0 : i64, scratch_operands = 0 : i64, tpu.core_type = #tpu.core_type<tc>, window_params = [{transform_indices = @transform_0, window_bounds = array<i64: 2, 32, 384>}, {transform_indices = @transform_1, window_bounds = array<i64: 2, 32, 384>}]} {
    %c0 = arith.constant 0 : index
    %c0_0 = arith.constant 0 : index
    %c0_1 = arith.constant 0 : index
    %0 = vector.load %arg1[%c0, %c0_0, %c0_1] : memref<2x32x384xf32, #tpu.memory_space<vmem>>, vector<2x32x384xf32>
    %1 = arith.mulf %0, %0 : vector<2x32x384xf32>
    %cst = arith.constant dense<0.000000e+00> : vector<2x384xf32>
    %2 = vector.multi_reduction <add>, %1, %cst [1] : vector<2x32x384xf32> to vector<2x384xf32>
    %3 = vector.shape_cast %2 : vector<2x384xf32> to vector<2x1x384xf32>
    %4 = math.rsqrt %3 : vector<2x1x384xf32>
    %5 = vector.broadcast %4 : vector<2x1x384xf32> to vector<2x32x384xf32>
    %6 = arith.mulf %0, %5 : vector<2x32x384xf32>
    %c0_2 = arith.constant 0 : index
    %c0_3 = arith.constant 0 : index
    %c0_4 = arith.constant 0 : index
    %7 = vector.load %arg2[%c0_2, %c0_3, %c0_4] : memref<2x32x384xf32, #tpu.memory_space<vmem>>, vector<2x32x384xf32>
    tpu.vector_store %arg2[%c0_2, %c0_3, %c0_4], %6 {strides = array<i32>} : memref<2x32x384xf32, #tpu.memory_space<vmem>>, vector<2x32x384xf32>,
    return
  }
  func.func @transform_0(%arg0: i32) -> (i32, i32, i32) {
    %c0_i32 = arith.constant 0 : i32
    %c0_i32_0 = arith.constant 0 : i32
    %c0_i32_1 = arith.constant 0 : i32
    return %c0_i32, %c0_i32_0, %arg0 : i32, i32, i32
  }
  func.func @transform_1(%arg0: i32) -> (i32, i32, i32) {
    %c0_i32 = arith.constant 0 : i32
    %c0_i32_0 = arith.constant 0 : i32
    %c0_i32_1 = arith.constant 0 : i32
    return %c0_i32, %c0_i32_0, %arg0 : i32, i32, i32
  }
}

</mosaic_0001>

<llo_original>
// kernel: tpu_custom_call.1
$region0: #{tpu_custom_call.1}
  #allocation0 [shape = 'u32[]', space=smem, size = 0x4, offset = 0x4, fixed_abs, tag = 'smem constant byte address 0x4 - core index']
  #allocation1 [shape = 'u32[144,128]{1,0:T(1,128)}', space=vmem, size = 0x12000, scoped, tag = 'internal scratch']
  %s0 = inlined_call_operand.hbm [shape: f32[2,32,384], index: 0, kind: input, shape index: {}]
  %s1 = inlined_call_operand.hbm [shape: f32[2,32,384], index: 1, kind: output, shape index: {}]
  %s2 = sld [smem:[#allocation0]]
  $region18: #{tpu_custom_call.1} parent=0
    _
  %s4 = ssub.s32 1, %s2
  %s5 = scalar_select 0, %s4, %s2
  $region1: #{tpu_custom_call.1} parent=0
    #allocation2 [shape = 'u8[98304]{0}', space=vmem, size = 0x18000, scoped, tag = 'input window, operand 0, single buffered']
    #allocation3 [shape = 's32[1]{0}', space=sflag, size = 0x4, scoped, tag = 'scoped memory for tpu_custom_call.1']
    #allocation4 [shape = 's32[1]{0}', space=sflag, size = 0x4, scoped, tag = 'scoped memory for tpu_custom_call.1']
    #allocation5 [shape = 'u8[98304]{0}', space=vmem, size = 0x18000, scoped, tag = 'output window, operand 0, single buffered']
    %6 = vsyncpa [#allocation3], 0
    %7 = vsyncpa [#allocation4], 0
    // Predicated region
    $region2: #{tpu_custom_call.1} parent=1 // pred_check
      _
    $region3: #{tpu_custom_call.1} parent=1 // pred_check_branch
      %9 = sbr.rel (0) target = $region5
    $region4: #{tpu_custom_call.1} parent=1 // pred_region
      %s11 = ssub.s32 3072, 3072
      %12 = vsyncadd [#allocation3], %s11
      %s13 = sshll.u32 [#allocation2], 4
      %s14 = int_to_ptr.vmem [resolvable:$true] %s13
      %19 = dma.hbm_to_vmem [thread:$0]  %s0, 3072, %s14, [#allocation3], 384, 384, 24
    $region5: #{tpu_custom_call.1} parent=1 // pred_fallthru
      _
    // Predicated region
    $region6: #{tpu_custom_call.1} parent=1 // pred_check
      _
    $region7: #{tpu_custom_call.1} parent=1 // pred_check_branch
      %21 = sbr.rel (0) target = $region9
    $region8: #{tpu_custom_call.1} parent=1 // pred_region
      %22 = dma.done [#allocation3], 3072
    $region9: #{tpu_custom_call.1} parent=1 // pred_fallthru
      _
    %v23 = vld [vmem:[#allocation2] sm:$0xff]
    %v24 = vld [vmem:[#allocation2 + $0x8] sm:$0xff]
    %v25 = vld [vmem:[#allocation2 + $0x10] sm:$0xff]
    %v26 = vld [vmem:[#allocation2 + $0x18] sm:$0xff]
    %v27 = vld [vmem:[#allocation2 + $0x20] sm:$0xff]
    %v28 = vld [vmem:[#allocation2 + $0x28] sm:$0xff]
    %v29 = vld [vmem:[#allocation2 + $0x30] sm:$0xff]
    %v30 = vld [vmem:[#allocation2 + $0x38] sm:$0xff]
    %v31 = vld [vmem:[#allocation2 + $0x40] sm:$0xff]
    %v32 = vld [vmem:[#allocation2 + $0x48] sm:$0xff]
    %v33 = vld [vmem:[#allocation2 + $0x50] sm:$0xff]
    %v34 = vld [vmem:[#allocation2 + $0x58] sm:$0xff]
    %v35 = vld [vmem:[#allocation2 + $0x60] sm:$0xff]
    %v36 = vld [vmem:[#allocation2 + $0x68] sm:$0xff]
    %v37 = vld [vmem:[#allocation2 + $0x70] sm:$0xff]
    %v38 = vld [vmem:[#allocation2 + $0x78] sm:$0xff]
    %v39 = vld [vmem:[#allocation2 + $0x80] sm:$0xff]
    %v40 = vld [vmem:[#allocation2 + $0x88] sm:$0xff]
    %v41 = vld [vmem:[#allocation2 + $0x90] sm:$0xff]
    %v42 = vld [vmem:[#allocation2 + $0x98] sm:$0xff]
    %v43 = vld [vmem:[#allocation2 + $0xa0] sm:$0xff]
    %v44 = vld [vmem:[#allocation2 + $0xa8] sm:$0xff]
    %v45 = vld [vmem:[#allocation2 + $0xb0] sm:$0xff]
    %v46 = vld [vmem:[#allocation2 + $0xb8] sm:$0xff]
    %v47 = vmul.f32 %v23, %v23
    %v48 = vmul.f32 %v24, %v24
    %v49 = vmul.f32 %v25, %v25
    %v50 = vmul.f32 %v26, %v26
    %v51 = vmul.f32 %v27, %v27
    %v52 = vmul.f32 %v28, %v28
    %v53 = vmul.f32 %v29, %v29
    %v54 = vmul.f32 %v30, %v30
    %v55 = vmul.f32 %v31, %v31
    %v56 = vmul.f32 %v32, %v32
    %v57 = vmul.f32 %v33, %v33
    %v58 = vmul.f32 %v34, %v34
    %v59 = vmul.f32 %v35, %v35
    %v60 = vmul.f32 %v36, %v36
    %v61 = vmul.f32 %v37, %v37
    %v62 = vmul.f32 %v38, %v38
    %v63 = vmul.f32 %v39, %v39
    %v64 = vmul.f32 %v40, %v40
    %v65 = vmul.f32 %v41, %v41
    %v66 = vmul.f32 %v42, %v42
    %v67 = vmul.f32 %v43, %v43
    %v68 = vmul.f32 %v44, %v44
    %v69 = vmul.f32 %v45, %v45
    %v70 = vmul.f32 %v46, %v46
    %v71 = vadd.f32 %v47, %v50
    %v72 = vadd.f32 %v71, %v53
    %v73 = vadd.f32 %v72, %v56
    %v74 = vrot.slane %v73, 4
    %v75 = vadd.f32 %v73, %v74
    %v76 = vrot.slane %v75, 2
    %v77 = vadd.f32 %v75, %v76
    %v78 = vrot.slane %v77, 1
    %v79 = vadd.f32 %v77, %v78
    %v80 = vadd.f32 %v48, %v51
    %v81 = vadd.f32 %v80, %v54
    %v82 = vadd.f32 %v81, %v57
    %v83 = vrot.slane %v82, 4
    %v84 = vadd.f32 %v82, %v83
    %v85 = vrot.slane %v84, 2
    %v86 = vadd.f32 %v84, %v85
    %v87 = vrot.slane %v86, 1
    %v88 = vadd.f32 %v86, %v87
    %v89 = vadd.f32 %v49, %v52
    %v90 = vadd.f32 %v89, %v55
    %v91 = vadd.f32 %v90, %v58
    %v92 = vrot.slane %v91, 4
    %v93 = vadd.f32 %v91, %v92
    %v94 = vrot.slane %v93, 2
    %v95 = vadd.f32 %v93, %v94
    %v96 = vrot.slane %v95, 1
    %v97 = vadd.f32 %v95, %v96
    %v98 = vadd.f32 %v59, %v62
    %v99 = vadd.f32 %v98, %v65
    %v100 = vadd.f32 %v99, %v68
    %v101 = vrot.slane %v100, 4
    %v102 = vadd.f32 %v100, %v101
    %v103 = vrot.slane %v102, 2
    %v104 = vadd.f32 %v102, %v103
    %v105 = vrot.slane %v104, 1
    %v106 = vadd.f32 %v104, %v105
    %v107 = vadd.f32 %v60, %v63
    %v108 = vadd.f32 %v107, %v66
    %v109 = vadd.f32 %v108, %v69
    %v110 = vrot.slane %v109, 4
    %v111 = vadd.f32 %v109, %v110
    %v112 = vrot.slane %v111, 2
    %v113 = vadd.f32 %v111, %v112
    %v114 = vrot.slane %v113, 1
    %v115 = vadd.f32 %v113, %v114
    %v116 = vadd.f32 %v61, %v64
    %v117 = vadd.f32 %v116, %v67
    %v118 = vadd.f32 %v117, %v70
    %v119 = vrot.slane %v118, 4
    %v120 = vadd.f32 %v118, %v119
    %v121 = vrot.slane %v120, 2
    %v122 = vadd.f32 %v120, %v121
    %v123 = vrot.slane %v122, 1
    %v124 = vadd.f32 %v122, %v123
    %v125 = vrsqrt.pop %v79
    %v126 = vrsqrt.pop %v88
    %v127 = vrsqrt.pop %v97
    %v128 = vrsqrt.pop %v106
    %v129 = vrsqrt.pop %v115
    %v130 = vrsqrt.pop %v124
    %v131 = vmul.f32 %v23, %v125
    %v132 = vmul.f32 %v24, %v126
    %v133 = vmul.f32 %v25, %v127
    %v134 = vmul.f32 %v26, %v125
    %v135 = vmul.f32 %v27, %v126
    %v136 = vmul.f32 %v28, %v127
    %v137 = vmul.f32 %v29, %v125
    %v138 = vmul.f32 %v30, %v126
    %v139 = vmul.f32 %v31, %v127
    %v140 = vmul.f32 %v32, %v125
    %v141 = vmul.f32 %v33, %v126
    %v142 = vmul.f32 %v34, %v127
    %v143 = vmul.f32 %v35, %v128
    %v144 = vmul.f32 %v36, %v129
    %v145 = vmul.f32 %v37, %v130
    %v146 = vmul.f32 %v38, %v128
    %v147 = vmul.f32 %v39, %v129
    %v148 = vmul.f32 %v40, %v130
    %v149 = vmul.f32 %v41, %v128
    %v150 = vmul.f32 %v42, %v129
    %v151 = vmul.f32 %v43, %v130
    %v152 = vmul.f32 %v44, %v128
    %v153 = vmul.f32 %v45, %v129
    %v154 = vmul.f32 %v46, %v130
    %155 = vst [vmem:[#allocation5] sm:$0xff] %v131
    %156 = vst [vmem:[#allocation5 + $0x8] sm:$0xff] %v132
    %157 = vst [vmem:[#allocation5 + $0x10] sm:$0xff] %v133
    %158 = vst [vmem:[#allocation5 + $0x18] sm:$0xff] %v134
    %159 = vst [vmem:[#allocation5 + $0x20] sm:$0xff] %v135
    %160 = vst [vmem:[#allocation5 + $0x28] sm:$0xff] %v136
    %161 = vst [vmem:[#allocation5 + $0x30] sm:$0xff] %v137
    %162 = vst [vmem:[#allocation5 + $0x38] sm:$0xff] %v138
    %163 = vst [vmem:[#allocation5 + $0x40] sm:$0xff] %v139
    %164 = vst [vmem:[#allocation5 + $0x48] sm:$0xff] %v140
    %165 = vst [vmem:[#allocation5 + $0x50] sm:$0xff] %v141
    %166 = vst [vmem:[#allocation5 + $0x58] sm:$0xff] %v142
    %167 = vst [vmem:[#allocation5 + $0x60] sm:$0xff] %v143
    %168 = vst [vmem:[#allocation5 + $0x68] sm:$0xff] %v144
    %169 = vst [vmem:[#allocation5 + $0x70] sm:$0xff] %v145
    %170 = vst [vmem:[#allocation5 + $0x78] sm:$0xff] %v146
    %171 = vst [vmem:[#allocation5 + $0x80] sm:$0xff] %v147
    %172 = vst [vmem:[#allocation5 + $0x88] sm:$0xff] %v148
    %173 = vst [vmem:[#allocation5 + $0x90] sm:$0xff] %v149
    %174 = vst [vmem:[#allocation5 + $0x98] sm:$0xff] %v150
    %175 = vst [vmem:[#allocation5 + $0xa0] sm:$0xff] %v151
    %176 = vst [vmem:[#allocation5 + $0xa8] sm:$0xff] %v152
    %177 = vst [vmem:[#allocation5 + $0xb0] sm:$0xff] %v153
    %178 = vst [vmem:[#allocation5 + $0xb8] sm:$0xff] %v154
    // Predicated region
    $region10: #{tpu_custom_call.1} parent=1 // pred_check
      _
    $region11: #{tpu_custom_call.1} parent=1 // pred_check_branch
      %180 = sbr.rel (0) target = $region13
    $region12: #{tpu_custom_call.1} parent=1 // pred_region
      %s182 = ssub.s32 3072, 3072
      %183 = vsyncadd [#allocation4], %s182
      %s184 = sshll.u32 [#allocation5], 4
      %s185 = int_to_ptr.vmem [resolvable:$true] %s184
      %190 = dma.vmem_to_hbm [thread:$0]  %s185, 3072, %s1, [#allocation4], 384, 384, 24
    $region13: #{tpu_custom_call.1} parent=1 // pred_fallthru
      _
    // Predicated region
    $region14: #{tpu_custom_call.1} parent=1 // pred_check
      _
    $region15: #{tpu_custom_call.1} parent=1 // pred_check_branch
      %192 = sbr.rel (0) target = $region17
    $region16: #{tpu_custom_call.1} parent=1 // pred_region
      %193 = dma.done [#allocation4], 3072
    $region17: #{tpu_custom_call.1} parent=1 // pred_fallthru
      _
    %194 = vsyncpa [#allocation3], 1
    %195 = vsyncpa [#allocation4], 1

</llo_original>
